<compile_context>
chip_gen: v5e
topology: v5e:2x2
jax: 0.10.0
libtpu: 0.0.40
codegen_flags: <defaults>
</compile_context>

<pallas_src>
import math

import jax
import jax.numpy as jnp
from jax.experimental import pallas as pl
from jax.experimental.pallas import tpu as pltpu

# --- small synthetic BERT-like config ---
VOCAB = 100
B = 2            # batch (number of texts)
S = 8            # sequence length (after "tokenization" / padding)
H = 32           # hidden_size
NUM_HEADS = 2
HEAD_DIM = H // NUM_HEADS
INTER = 64       # intermediate (FFN) size
NUM_LAYERS = 2
EPS = 1e-12      # BERT LayerNorm eps

# --- lane-dense padded sizes (TPU lane width = 128) ---
HP = 128           # hidden padded to full lane width
IP = 128           # FFN intermediate padded
QKV_W = 3 * HP     # fused q|k|v projection width

# Row layout of the packed per-layer small-parameter slab p_small[L, 8, QKV_W]:
(ROW_B_QKV, ROW_B_O, ROW_LN1_G, ROW_LN1_B,
 ROW_B_FF1, ROW_B_FF2, ROW_LN2_G, ROW_LN2_B) = range(8)


# ---------------- fused encoder kernel ----------------

def fused_encoder_kernel(emb_ref, ln_emb_ref, wqkv_ref, wo_ref, w1_ref, w2_ref, psm_ref,
                         out_ref, x_scr):
    l = pl.program_id(1)
    num_l = pl.num_programs(1)

    lane = jax.lax.broadcasted_iota(jnp.int32, (1, HP), 1)
    hid_mask = (lane < H).astype(jnp.float32)          # 1.0 on real hidden lanes
    inv_h = 1.0 / H

    def layernorm(y, gamma, beta):
        # y is zero on lanes >= H; gamma/beta are zero-padded there, so the result
        # stays zero-padded while mean/var use the true hidden width H.
        mu = jnp.sum(y, axis=-1, keepdims=True) * inv_h
        cen = (y - mu) * hid_mask
        var = jnp.sum(cen * cen, axis=-1, keepdims=True) * inv_h
        return cen * jax.lax.rsqrt(var + EPS) * gamma + beta

    # Layer 0: pull this batch row's embeddings and apply the embedding LayerNorm,
    # making the activation VMEM-resident for the whole layer stack.
    @pl.when(l == 0)
    def _():
        x_scr[...] = layernorm(emb_ref[0],
                               ln_emb_ref[0:1, :],     # gamma
                               ln_emb_ref[1:2, :])     # beta

    x = x_scr[...]                                      # [S, HP]

    # --- fused Q/K/V projection: single MXU matmul (1/sqrt(head_dim) folded into Wq) ---
    qkv = jnp.dot(x, wqkv_ref[0], preferred_element_type=jnp.float32)
    qkv = qkv + psm_ref[0, ROW_B_QKV:ROW_B_QKV + 1, :]
    q = qkv[:, 0:HP]
    k = qkv[:, HP:2 * HP]
    v = qkv[:, 2 * HP:3 * HP]

    # --- per-head attention via lane masks (no sub-128 lane slices, no reshapes) ---
    # TODO(synk): padding attention mask omitted (all tokens treated as valid).
    ctx = jnp.zeros((S, HP), jnp.float32)
    for h in range(NUM_HEADS):                          # static 2-iteration loop
        lo, hi = h * HEAD_DIM, (h + 1) * HEAD_DIM
        head_mask = jnp.logical_and(lane >= lo, lane < hi).astype(jnp.float32)
        scores = jax.lax.dot_general(q * head_mask, k,
                                     (((1,), (1,)), ((), ())),
                                     preferred_element_type=jnp.float32)   # [S, S]
        scores = scores - jnp.max(scores, axis=-1, keepdims=True)
        p = jnp.exp(scores)
        p = p * pl.reciprocal(jnp.sum(p, axis=-1, keepdims=True), approx=True)
        ctx = ctx + jnp.dot(p, v * head_mask, preferred_element_type=jnp.float32)

    attn_out = jnp.dot(ctx, wo_ref[0], preferred_element_type=jnp.float32)
    attn_out = attn_out + psm_ref[0, ROW_B_O:ROW_B_O + 1, 0:HP]

    h1 = layernorm(x + attn_out,
                   psm_ref[0, ROW_LN1_G:ROW_LN1_G + 1, 0:HP],
                   psm_ref[0, ROW_LN1_B:ROW_LN1_B + 1, 0:HP])

    # --- feed-forward ---
    ff = jnp.dot(h1, w1_ref[0], preferred_element_type=jnp.float32)
    ff = ff + psm_ref[0, ROW_B_FF1:ROW_B_FF1 + 1, 0:IP]
    # TODO(synk): HF BERT uses exact erf-GELU; tanh approximation used here.
    ff = jax.nn.gelu(ff, approximate=True)
    ff = jnp.dot(ff, w2_ref[0], preferred_element_type=jnp.float32)
    ff = ff + psm_ref[0, ROW_B_FF2:ROW_B_FF2 + 1, 0:HP]

    x_new = layernorm(h1 + ff,
                      psm_ref[0, ROW_LN2_G:ROW_LN2_G + 1, 0:HP],
                      psm_ref[0, ROW_LN2_B:ROW_LN2_B + 1, 0:HP])
    x_scr[...] = x_new

    # Lane-dense (8,128) output store of the final hidden states, once per batch row.
    @pl.when(l == num_l - 1)
    def _():
        out_ref[0] = x_new


# ---------------- wrapper ----------------

def fused_encoder(emb, params):
    layer_w = lambda bshape: pl.BlockSpec(bshape, lambda b, l: (l, 0, 0))
    return pl.pallas_call(
        fused_encoder_kernel,
        out_shape=jax.ShapeDtypeStruct((B, S, HP), jnp.float32),
        grid_spec=pltpu.PrefetchScalarGridSpec(
            num_scalar_prefetch=0,
            grid=(B, NUM_LAYERS),
            in_specs=[
                pl.BlockSpec((1, S, HP), lambda b, l: (b, 0, 0)),   # embeddings (per batch row)
                pl.BlockSpec((8, HP), lambda b, l: (0, 0)),         # embedding LN gamma/beta
                layer_w((1, HP, QKV_W)),                            # fused qkv weight
                layer_w((1, HP, HP)),                               # attention output weight
                layer_w((1, HP, IP)),                               # FFN weight 1
                layer_w((1, IP, HP)),                               # FFN weight 2
                layer_w((1, 8, QKV_W)),                             # packed biases / LN params
            ],
            out_specs=pl.BlockSpec((1, S, HP), lambda b, l: (b, 0, 0)),
            scratch_shapes=[pltpu.VMEM((S, HP), jnp.float32)],      # VMEM-resident activation
        ),
        compiler_params=pltpu.CompilerParams(
            dimension_semantics=("parallel", "arbitrary")),
    )(emb, params['ln_emb'], params['w_qkv'], params['w_o'],
      params['w_ff1'], params['w_ff2'], params['p_small'])


def init_params(key):
    scale = 0.02
    keys = jax.random.split(key, 3 + NUM_LAYERS * 6)
    kit = iter(keys)

    def rnd(shape):
        return scale * jax.random.normal(next(kit), shape, dtype=jnp.float32)

    tok_emb = rnd((VOCAB, H))
    pos_emb = rnd((S, H))
    type_emb = rnd((2, H))

    # row 0 = gamma (ones over true H), row 1 = beta (zeros); rows 2..7 padding.
    ln_emb = jnp.zeros((8, HP), jnp.float32).at[0, :H].set(1.0)

    inv_sqrt_dh = 1.0 / math.sqrt(HEAD_DIM)
    wqkv_l, wo_l, w1_l, w2_l, psm_l = [], [], [], [], []
    for _ in range(NUM_LAYERS):
        wq = rnd((H, H)) * inv_sqrt_dh      # fold softmax 1/sqrt(head_dim) into Wq
        wk = rnd((H, H))
        wv = rnd((H, H))
        wo = rnd((H, H))
        w1 = rnd((H, INTER))
        w2 = rnd((INTER, H))

        wqkv = jnp.zeros((HP, QKV_W), jnp.float32)
        wqkv = wqkv.at[:H, 0:H].set(wq)
        wqkv = wqkv.at[:H, HP:HP + H].set(wk)
        wqkv = wqkv.at[:H, 2 * HP:2 * HP + H].set(wv)
        wqkv_l.append(wqkv)
        wo_l.append(jnp.zeros((HP, HP), jnp.float32).at[:H, :H].set(wo))
        w1_l.append(jnp.zeros((HP, IP), jnp.float32).at[:H, :INTER].set(w1))
        w2_l.append(jnp.zeros((IP, HP), jnp.float32).at[:INTER, :H].set(w2))

        # Packed small params: linear biases zero-initialized (as before),
        # LayerNorm gammas = 1 over the true hidden width, betas = 0.
        psm = jnp.zeros((8, QKV_W), jnp.float32)
        psm = psm.at[ROW_LN1_G, :H].set(1.0)
        psm = psm.at[ROW_LN2_G, :H].set(1.0)
        psm_l.append(psm)

    return {
        'tok_emb': tok_emb,
        'pos_emb': pos_emb,
        'type_emb': type_emb,
        'ln_emb': ln_emb,
        'w_qkv': jnp.stack(wqkv_l),     # [L, HP, 3*HP]
        'w_o': jnp.stack(wo_l),         # [L, HP, HP]
        'w_ff1': jnp.stack(w1_l),       # [L, HP, IP]
        'w_ff2': jnp.stack(w2_l),       # [L, IP, HP]
        'p_small': jnp.stack(psm_l),    # [L, 8, 3*HP]
    }


@jax.jit
def hf_text_encoder_forward(token_ids, params):
    """token_ids: int32 [B, S] (stands in for the HF tokenizer output).
    Returns cls_emb: float32 [B, H] — hidden state of token 0 ('[CLS]')."""
    # Embedding lookup (glue, plain JAX gather), then zero-pad hidden to 128 lanes.
    emb = (params['tok_emb'][token_ids]
           + params['pos_emb'][None, :, :]
           + params['type_emb'][0][None, None, :])               # [B, S, H]
    emb = jnp.pad(emb, ((0, 0), (0, 0), (0, HP - H)))            # [B, S, HP]
    last_hidden = fused_encoder(emb, params)                     # [B, S, HP]
    cls_emb = last_hidden[:, 0, :H]                              # [B, H]
    return cls_emb


if __name__ == "__main__":
    key = jax.random.PRNGKey(0)
    k_ids, k_params = jax.random.split(key)
    # TODO(synk): HF tokenizer (strings -> ids) has no Pallas equivalent; use synthetic ids.
    token_ids = jax.random.randint(k_ids, (B, S), 0, VOCAB, dtype=jnp.int32)
    params = init_params(k_params)

    cls_emb = hf_text_encoder_forward(token_ids, params)
    cls_emb = jax.block_until_ready(cls_emb)

    assert cls_emb.shape == (B, H), cls_emb.shape
    assert cls_emb.dtype == jnp.float32
    assert bool(jnp.all(jnp.isfinite(cls_emb)))
    print("KERNEL_OK")
</pallas_src>

<mosaic_0001>
module attributes {stable_mosaic.version = 11 : i64} {
  func.func @fused_encoder_kernel(%arg0: i32, %arg1: i32, %arg2: memref<1x8x128xf32, #tpu.memory_space<vmem>>, %arg3: memref<8x128xf32, #tpu.memory_space<vmem>>, %arg4: memref<1x128x384xf32, #tpu.memory_space<vmem>>, %arg5: memref<1x128x128xf32, #tpu.memory_space<vmem>>, %arg6: memref<1x128x128xf32, #tpu.memory_space<vmem>>, %arg7: memref<1x128x128xf32, #tpu.memory_space<vmem>>, %arg8: memref<1x8x384xf32, #tpu.memory_space<vmem>>, %arg9: memref<1x8x128xf32, #tpu.memory_space<vmem>>, %arg10: memref<8x128xf32, #tpu.memory_space<vmem>>) attributes {dimension_semantics = [#tpu.dimension_semantics<parallel>, #tpu.dimension_semantics<arbitrary>], iteration_bounds = array<i64: 2, 2>, scalar_prefetch = 0 : i64, scratch_operands = 1 : i64, tpu.core_type = #tpu.core_type<tc>, window_params = [{transform_indices = @transform_0, window_bounds = array<i64: 1, 8, 128>}, {pipeline_mode = #tpu.pipeline_mode<synchronous>, transform_indices = @transform_1, window_bounds = array<i64: 8, 128>}, {transform_indices = @transform_2, window_bounds = array<i64: 1, 128, 384>}, {transform_indices = @transform_3, window_bounds = array<i64: 1, 128, 128>}, {transform_indices = @transform_4, window_bounds = array<i64: 1, 128, 128>}, {transform_indices = @transform_5, window_bounds = array<i64: 1, 128, 128>}, {transform_indices = @transform_6, window_bounds = array<i64: 1, 8, 384>}, {transform_indices = @transform_7, window_bounds = array<i64: 1, 8, 128>}]} {
    %0 = tpu.iota {dimensions = array<i32: 1>} : vector<1x128xi32>
    %c32_i32 = arith.constant 32 : i32
    %1 = vector.broadcast %c32_i32 : i32 to vector<1x128xi32>
    %2 = arith.cmpi slt, %0, %1 : vector<1x128xi32>
    %3 = arith.extui %2 : vector<1x128xi1> to vector<1x128xi32>
    %4 = arith.sitofp %3 : vector<1x128xi32> to vector<1x128xf32>
    %c0_i32 = arith.constant 0 : i32
    %5 = arith.cmpi eq, %arg1, %c0_i32 : i32
    %6 = arith.extui %5 : i1 to i32
    %c0_i32_0 = arith.constant 0 : i32
    %7 = arith.cmpi ne, %6, %c0_i32_0 : i32
    scf.if %7 {
      %c0_63 = arith.constant 0 : index
      %c0_64 = arith.constant 0 : index
      %c0_65 = arith.constant 0 : index
      %160 = vector.load %arg2[%c0_63, %c0_64, %c0_65] : memref<1x8x128xf32, #tpu.memory_space<vmem>>, vector<1x8x128xf32>
      %161 = vector.shape_cast %160 : vector<1x8x128xf32> to vector<8x128xf32>
      %c0_66 = arith.constant 0 : index
      %c0_67 = arith.constant 0 : index
      %162 = vector.load %arg3[%c0_66, %c0_67] : memref<8x128xf32, #tpu.memory_space<vmem>>, vector<1x128xf32>
      %c1_68 = arith.constant 1 : index
      %c0_69 = arith.constant 0 : index
      %163 = vector.load %arg3[%c1_68, %c0_69] : memref<8x128xf32, #tpu.memory_space<vmem>>, vector<1x128xf32>
      %cst_70 = arith.constant dense<0.000000e+00> : vector<8xf32>
      %164 = vector.multi_reduction <add>, %161, %cst_70 [1] : vector<8x128xf32> to vector<8xf32>
      %165 = vector.shape_cast %164 : vector<8xf32> to vector<8x1xf32>
      %cst_71 = arith.constant 3.125000e-02 : f32
      %166 = vector.broadcast %cst_71 : f32 to vector<8x1xf32>
      %167 = arith.mulf %165, %166 : vector<8x1xf32>
      %168 = vector.broadcast %167 : vector<8x1xf32> to vector<8x128xf32>
      %169 = arith.subf %161, %168 : vector<8x128xf32>
      %170 = vector.broadcast %4 : vector<1x128xf32> to vector<8x128xf32>
      %171 = arith.mulf %169, %170 : vector<8x128xf32>
      %172 = arith.mulf %171, %171 : vector<8x128xf32>
      %cst_72 = arith.constant dense<0.000000e+00> : vector<8xf32>
      %173 = vector.multi_reduction <add>, %172, %cst_72 [1] : vector<8x128xf32> to vector<8xf32>
      %174 = vector.shape_cast %173 : vector<8xf32> to vector<8x1xf32>
      %cst_73 = arith.constant 3.125000e-02 : f32
      %175 = vector.broadcast %cst_73 : f32 to vector<8x1xf32>
      %176 = arith.mulf %174, %175 : vector<8x1xf32>
      %cst_74 = arith.constant 9.99999996E-13 : f32
      %177 = vector.broadcast %cst_74 : f32 to vector<8x1xf32>
      %178 = arith.addf %176, %177 : vector<8x1xf32>
      %179 = math.rsqrt %178 : vector<8x1xf32>
      %180 = vector.broadcast %179 : vector<8x1xf32> to vector<8x128xf32>
      %181 = arith.mulf %171, %180 : vector<8x128xf32>
      %182 = vector.broadcast %162 : vector<1x128xf32> to vector<8x128xf32>
      %183 = arith.mulf %181, %182 : vector<8x128xf32>
      %184 = vector.broadcast %163 : vector<1x128xf32> to vector<8x128xf32>
      %185 = arith.addf %183, %184 : vector<8x128xf32>
      %c0_75 = arith.constant 0 : index
      %c0_76 = arith.constant 0 : index
      %186 = vector.load %arg10[%c0_75, %c0_76] : memref<8x128xf32, #tpu.memory_space<vmem>>, vector<8x128xf32>
      tpu.vector_store %arg10[%c0_75, %c0_76], %185 {strides = array<i32>} : memref<8x128xf32, #tpu.memory_space<vmem>>, vector<8x128xf32>,
    } else {
    }
    %c0 = arith.constant 0 : index
    %c0_1 = arith.constant 0 : index
    %8 = vector.load %arg10[%c0, %c0_1] : memref<8x128xf32, #tpu.memory_space<vmem>>, vector<8x128xf32>
    %c0_2 = arith.constant 0 : index
    %c0_3 = arith.constant 0 : index
    %c0_4 = arith.constant 0 : index
    %9 = vector.load %arg4[%c0_2, %c0_3, %c0_4] : memref<1x128x384xf32, #tpu.memory_space<vmem>>, vector<1x128x384xf32>
    %10 = vector.shape_cast %9 : vector<1x128x384xf32> to vector<128x384xf32>
    %cst = arith.constant dense<0.000000e+00> : vector<8x384xf32>
    %11 = tpu.matmul %8, %10, %cst {dimension_numbers = #tpu.dot_dimension_numbers<[1], [0], [0], [1], [0, 0, 1, 1], [], []>} : vector<8x128xf32>, vector<128x384xf32>, vector<8x384xf32> -> vector<8x384xf32>
    %c0_5 = arith.constant 0 : index
    %c0_6 = arith.constant 0 : index
    %c0_7 = arith.constant 0 : index
    %12 = vector.load %arg8[%c0_5, %c0_6, %c0_7] : memref<1x8x384xf32, #tpu.memory_space<vmem>>, vector<1x1x384xf32>
    %13 = vector.shape_cast %12 : vector<1x1x384xf32> to vector<1x384xf32>
    %14 = vector.broadcast %13 : vector<1x384xf32> to vector<8x384xf32>
    %15 = arith.addf %11, %14 : vector<8x384xf32>
    %16 = vector.extract_strided_slice %15 {offsets = [0, 0], sizes = [8, 128], strides = [1, 1]} : vector<8x384xf32> to vector<8x128xf32>
    %17 = vector.extract_strided_slice %15 {offsets = [0, 128], sizes = [8, 128], strides = [1, 1]} : vector<8x384xf32> to vector<8x128xf32>
    %18 = vector.extract_strided_slice %15 {offsets = [0, 256], sizes = [8, 128], strides = [1, 1]} : vector<8x384xf32> to vector<8x128xf32>
    %cst_8 = arith.constant 0.000000e+00 : f32
    %19 = vector.broadcast %cst_8 : f32 to vector<8x128xf32>
    %c0_i32_9 = arith.constant 0 : i32
    %20 = vector.broadcast %c0_i32_9 : i32 to vector<1x128xi32>
    %21 = arith.cmpi sge, %0, %20 : vector<1x128xi32>
    %c16_i32 = arith.constant 16 : i32
    %22 = vector.broadcast %c16_i32 : i32 to vector<1x128xi32>
    %23 = arith.cmpi slt, %0, %22 : vector<1x128xi32>
    %24 = arith.andi %21, %23 : vector<1x128xi1>
    %25 = arith.extui %24 : vector<1x128xi1> to vector<1x128xi32>
    %26 = arith.sitofp %25 : vector<1x128xi32> to vector<1x128xf32>
    %27 = vector.broadcast %26 : vector<1x128xf32> to vector<8x128xf32>
    %28 = arith.mulf %16, %27 : vector<8x128xf32>
    %cst_10 = arith.constant dense<0.000000e+00> : vector<8x8xf32>
    %29 = tpu.matmul %28, %17, %cst_10 {dimension_numbers = #tpu.dot_dimension_numbers<[1], [1], [0], [0], [0, 0, 1, 0], [], []>} : vector<8x128xf32>, vector<8x128xf32>, vector<8x8xf32> -> vector<8x8xf32>
    %cst_11 = arith.constant dense<0xFF800000> : vector<8xf32>
    %30 = vector.multi_reduction <maximumf>, %29, %cst_11 [1] : vector<8x8xf32> to vector<8xf32>
    %31 = vector.shape_cast %30 : vector<8xf32> to vector<8x1xf32>
    %32 = vector.broadcast %31 : vector<8x1xf32> to vector<8x8xf32>
    %33 = arith.subf %29, %32 : vector<8x8xf32>
    %34 = math.exp %33 : vector<8x8xf32>
    %cst_12 = arith.constant dense<0.000000e+00> : vector<8xf32>
    %35 = vector.multi_reduction <add>, %34, %cst_12 [1] : vector<8x8xf32> to vector<8xf32>
    %36 = vector.shape_cast %35 : vector<8xf32> to vector<8x1xf32>
    %37 = tpu.reciprocal %36 {approx = true} : vector<8x1xf32> -> vector<8x1xf32>
    %38 = vector.broadcast %37 : vector<8x1xf32> to vector<8x8xf32>
    %39 = arith.mulf %34, %38 : vector<8x8xf32>
    %40 = vector.broadcast %26 : vector<1x128xf32> to vector<8x128xf32>
    %41 = arith.mulf %18, %40 : vector<8x128xf32>
    %cst_13 = arith.constant dense<0.000000e+00> : vector<8x128xf32>
    %42 = tpu.matmul %39, %41, %cst_13 {dimension_numbers = #tpu.dot_dimension_numbers<[1], [0], [0], [1], [0, 0, 1, 1], [], []>} : vector<8x8xf32>, vector<8x128xf32>, vector<8x128xf32> -> vector<8x128xf32>
    %43 = arith.addf %19, %42 : vector<8x128xf32>
    %c16_i32_14 = arith.constant 16 : i32
    %44 = vector.broadcast %c16_i32_14 : i32 to vector<1x128xi32>
    %45 = arith.cmpi sge, %0, %44 : vector<1x128xi32>
    %c32_i32_15 = arith.constant 32 : i32
    %46 = vector.broadcast %c32_i32_15 : i32 to vector<1x128xi32>
    %47 = arith.cmpi slt, %0, %46 : vector<1x128xi32>
    %48 = arith.andi %45, %47 : vector<1x128xi1>
    %49 = arith.extui %48 : vector<1x128xi1> to vector<1x128xi32>
    %50 = arith.sitofp %49 : vector<1x128xi32> to vector<1x128xf32>
    %51 = vector.broadcast %50 : vector<1x128xf32> to vector<8x128xf32>
    %52 = arith.mulf %16, %51 : vector<8x128xf32>
    %cst_16 = arith.constant dense<0.000000e+00> : vector<8x8xf32>
    %53 = tpu.matmul %52, %17, %cst_16 {dimension_numbers = #tpu.dot_dimension_numbers<[1], [1], [0], [0], [0, 0, 1, 0], [], []>} : vector<8x128xf32>, vector<8x128xf32>, vector<8x8xf32> -> vector<8x8xf32>
    %cst_17 = arith.constant dense<0xFF800000> : vector<8xf32>
    %54 = vector.multi_reduction <maximumf>, %53, %cst_17 [1] : vector<8x8xf32> to vector<8xf32>
    %55 = vector.shape_cast %54 : vector<8xf32> to vector<8x1xf32>
    %56 = vector.broadcast %55 : vector<8x1xf32> to vector<8x8xf32>
    %57 = arith.subf %53, %56 : vector<8x8xf32>
    %58 = math.exp %57 : vector<8x8xf32>
    %cst_18 = arith.constant dense<0.000000e+00> : vector<8xf32>
    %59 = vector.multi_reduction <add>, %58, %cst_18 [1] : vector<8x8xf32> to vector<8xf32>
    %60 = vector.shape_cast %59 : vector<8xf32> to vector<8x1xf32>
    %61 = tpu.reciprocal %60 {approx = true} : vector<8x1xf32> -> vector<8x1xf32>
    %62 = vector.broadcast %61 : vector<8x1xf32> to vector<8x8xf32>
    %63 = arith.mulf %58, %62 : vector<8x8xf32>
    %64 = vector.broadcast %50 : vector<1x128xf32> to vector<8x128xf32>
    %65 = arith.mulf %18, %64 : vector<8x128xf32>
    %cst_19 = arith.constant dense<0.000000e+00> : vector<8x128xf32>
    %66 = tpu.matmul %63, %65, %cst_19 {dimension_numbers = #tpu.dot_dimension_numbers<[1], [0], [0], [1], [0, 0, 1, 1], [], []>} : vector<8x8xf32>, vector<8x128xf32>, vector<8x128xf32> -> vector<8x128xf32>
    %67 = arith.addf %43, %66 : vector<8x128xf32>
    %c0_20 = arith.constant 0 : index
    %c0_21 = arith.constant 0 : index
    %c0_22 = arith.constant 0 : index
    %68 = vector.load %arg5[%c0_20, %c0_21, %c0_22] : memref<1x128x128xf32, #tpu.memory_space<vmem>>, vector<1x128x128xf32>
    %69 = vector.shape_cast %68 : vector<1x128x128xf32> to vector<128x128xf32>
    %cst_23 = arith.constant dense<0.000000e+00> : vector<8x128xf32>
    %70 = tpu.matmul %67, %69, %cst_23 {dimension_numbers = #tpu.dot_dimension_numbers<[1], [0], [0], [1], [0, 0, 1, 1], [], []>} : vector<8x128xf32>, vector<128x128xf32>, vector<8x128xf32> -> vector<8x128xf32>
    %c0_24 = arith.constant 0 : index
    %c1 = arith.constant 1 : index
    %c0_25 = arith.constant 0 : index
    %71 = vector.load %arg8[%c0_24, %c1, %c0_25] : memref<1x8x384xf32, #tpu.memory_space<vmem>>, vector<1x1x128xf32>
    %72 = vector.shape_cast %71 : vector<1x1x128xf32> to vector<1x128xf32>
    %73 = vector.broadcast %72 : vector<1x128xf32> to vector<8x128xf32>
    %74 = arith.addf %70, %73 : vector<8x128xf32>
    %75 = arith.addf %8, %74 : vector<8x128xf32>
    %c0_26 = arith.constant 0 : index
    %c2 = arith.constant 2 : index
    %c0_27 = arith.constant 0 : index
    %76 = vector.load %arg8[%c0_26, %c2, %c0_27] : memref<1x8x384xf32, #tpu.memory_space<vmem>>, vector<1x1x128xf32>
    %77 = vector.shape_cast %76 : vector<1x1x128xf32> to vector<1x128xf32>
    %c0_28 = arith.constant 0 : index
    %c3 = arith.constant 3 : index
    %c0_29 = arith.constant 0 : index
    %78 = vector.load %arg8[%c0_28, %c3, %c0_29] : memref<1x8x384xf32, #tpu.memory_space<vmem>>, vector<1x1x128xf32>
    %79 = vector.shape_cast %78 : vector<1x1x128xf32> to vector<1x128xf32>
    %cst_30 = arith.constant dense<0.000000e+00> : vector<8xf32>
    %80 = vector.multi_reduction <add>, %75, %cst_30 [1] : vector<8x128xf32> to vector<8xf32>
    %81 = vector.shape_cast %80 : vector<8xf32> to vector<8x1xf32>
    %cst_31 = arith.constant 3.125000e-02 : f32
    %82 = vector.broadcast %cst_31 : f32 to vector<8x1xf32>
    %83 = arith.mulf %81, %82 : vector<8x1xf32>
    %84 = vector.broadcast %83 : vector<8x1xf32> to vector<8x128xf32>
    %85 = arith.subf %75, %84 : vector<8x128xf32>
    %86 = vector.broadcast %4 : vector<1x128xf32> to vector<8x128xf32>
    %87 = arith.mulf %85, %86 : vector<8x128xf32>
    %88 = arith.mulf %87, %87 : vector<8x128xf32>
    %cst_32 = arith.constant dense<0.000000e+00> : vector<8xf32>
    %89 = vector.multi_reduction <add>, %88, %cst_32 [1] : vector<8x128xf32> to vector<8xf32>
    %90 = vector.shape_cast %89 : vector<8xf32> to vector<8x1xf32>
    %cst_33 = arith.constant 3.125000e-02 : f32
    %91 = vector.broadcast %cst_33 : f32 to vector<8x1xf32>
    %92 = arith.mulf %90, %91 : vector<8x1xf32>
    %cst_34 = arith.constant 9.99999996E-13 : f32
    %93 = vector.broadcast %cst_34 : f32 to vector<8x1xf32>
    %94 = arith.addf %92, %93 : vector<8x1xf32>
    %95 = math.rsqrt %94 : vector<8x1xf32>
    %96 = vector.broadcast %95 : vector<8x1xf32> to vector<8x128xf32>
    %97 = arith.mulf %87, %96 : vector<8x128xf32>
    %98 = vector.broadcast %77 : vector<1x128xf32> to vector<8x128xf32>
    %99 = arith.mulf %97, %98 : vector<8x128xf32>
    %100 = vector.broadcast %79 : vector<1x128xf32> to vector<8x128xf32>
    %101 = arith.addf %99, %100 : vector<8x128xf32>
    %c0_35 = arith.constant 0 : index
    %c0_36 = arith.constant 0 : index
    %c0_37 = arith.constant 0 : index
    %102 = vector.load %arg6[%c0_35, %c0_36, %c0_37] : memref<1x128x128xf32, #tpu.memory_space<vmem>>, vector<1x128x128xf32>
    %103 = vector.shape_cast %102 : vector<1x128x128xf32> to vector<128x128xf32>
    %cst_38 = arith.constant dense<0.000000e+00> : vector<8x128xf32>
    %104 = tpu.matmul %101, %103, %cst_38 {dimension_numbers = #tpu.dot_dimension_numbers<[1], [0], [0], [1], [0, 0, 1, 1], [], []>} : vector<8x128xf32>, vector<128x128xf32>, vector<8x128xf32> -> vector<8x128xf32>
    %c0_39 = arith.constant 0 : index
    %c4 = arith.constant 4 : index
    %c0_40 = arith.constant 0 : index
    %105 = vector.load %arg8[%c0_39, %c4, %c0_40] : memref<1x8x384xf32, #tpu.memory_space<vmem>>, vector<1x1x128xf32>
    %106 = vector.shape_cast %105 : vector<1x1x128xf32> to vector<1x128xf32>
    %107 = vector.broadcast %106 : vector<1x128xf32> to vector<8x128xf32>
    %108 = arith.addf %104, %107 : vector<8x128xf32>
    %109 = arith.mulf %108, %108 : vector<8x128xf32>
    %110 = arith.mulf %108, %109 : vector<8x128xf32>
    %cst_41 = arith.constant 4.471500e-02 : f32
    %111 = vector.broadcast %cst_41 : f32 to vector<8x128xf32>
    %112 = arith.mulf %111, %110 : vector<8x128xf32>
    %113 = arith.addf %108, %112 : vector<8x128xf32>
    %cst_42 = arith.constant 0.797884583 : f32
    %114 = vector.broadcast %cst_42 : f32 to vector<8x128xf32>
    %115 = arith.mulf %114, %113 : vector<8x128xf32>
    %116 = math.tanh %115 : vector<8x128xf32>
    %cst_43 = arith.constant 1.000000e+00 : f32
    %117 = vector.broadcast %cst_43 : f32 to vector<8x128xf32>
    %118 = arith.addf %117, %116 : vector<8x128xf32>
    %cst_44 = arith.constant 5.000000e-01 : f32
    %119 = vector.broadcast %cst_44 : f32 to vector<8x128xf32>
    %120 = arith.mulf %119, %118 : vector<8x128xf32>
    %121 = arith.mulf %108, %120 : vector<8x128xf32>
    %c0_45 = arith.constant 0 : index
    %c0_46 = arith.constant 0 : index
    %c0_47 = arith.constant 0 : index
    %122 = vector.load %arg7[%c0_45, %c0_46, %c0_47] : memref<1x128x128xf32, #tpu.memory_space<vmem>>, vector<1x128x128xf32>
    %123 = vector.shape_cast %122 : vector<1x128x128xf32> to vector<128x128xf32>
    %cst_48 = arith.constant dense<0.000000e+00> : vector<8x128xf32>
    %124 = tpu.matmul %121, %123, %cst_48 {dimension_numbers = #tpu.dot_dimension_numbers<[1], [0], [0], [1], [0, 0, 1, 1], [], []>} : vector<8x128xf32>, vector<128x128xf32>, vector<8x128xf32> -> vector<8x128xf32>
    %c0_49 = arith.constant 0 : index
    %c5 = arith.constant 5 : index
    %c0_50 = arith.constant 0 : index
    %125 = vector.load %arg8[%c0_49, %c5, %c0_50] : memref<1x8x384xf32, #tpu.memory_space<vmem>>, vector<1x1x128xf32>
    %126 = vector.shape_cast %125 : vector<1x1x128xf32> to vector<1x128xf32>
    %127 = vector.broadcast %126 : vector<1x128xf32> to vector<8x128xf32>
    %128 = arith.addf %124, %127 : vector<8x128xf32>
    %129 = arith.addf %101, %128 : vector<8x128xf32>
    %c0_51 = arith.constant 0 : index
    %c6 = arith.constant 6 : index
    %c0_52 = arith.constant 0 : index
    %130 = vector.load %arg8[%c0_51, %c6, %c0_52] : memref<1x8x384xf32, #tpu.memory_space<vmem>>, vector<1x1x128xf32>
    %131 = vector.shape_cast %130 : vector<1x1x128xf32> to vector<1x128xf32>
    %c0_53 = arith.constant 0 : index
    %c7 = arith.constant 7 : index
    %c0_54 = arith.constant 0 : index
    %132 = vector.load %arg8[%c0_53, %c7, %c0_54] : memref<1x8x384xf32, #tpu.memory_space<vmem>>, vector<1x1x128xf32>
    %133 = vector.shape_cast %132 : vector<1x1x128xf32> to vector<1x128xf32>
    %cst_55 = arith.constant dense<0.000000e+00> : vector<8xf32>
    %134 = vector.multi_reduction <add>, %129, %cst_55 [1] : vector<8x128xf32> to vector<8xf32>
    %135 = vector.shape_cast %134 : vector<8xf32> to vector<8x1xf32>
    %cst_56 = arith.constant 3.125000e-02 : f32
    %136 = vector.broadcast %cst_56 : f32 to vector<8x1xf32>
    %137 = arith.mulf %135, %136 : vector<8x1xf32>
    %138 = vector.broadcast %137 : vector<8x1xf32> to vector<8x128xf32>
    %139 = arith.subf %129, %138 : vector<8x128xf32>
    %140 = vector.broadcast %4 : vector<1x128xf32> to vector<8x128xf32>
    %141 = arith.mulf %139, %140 : vector<8x128xf32>
    %142 = arith.mulf %141, %141 : vector<8x128xf32>
    %cst_57 = arith.constant dense<0.000000e+00> : vector<8xf32>
    %143 = vector.multi_reduction <add>, %142, %cst_57 [1] : vector<8x128xf32> to vector<8xf32>
    %144 = vector.shape_cast %143 : vector<8xf32> to vector<8x1xf32>
    %cst_58 = arith.constant 3.125000e-02 : f32
    %145 = vector.broadcast %cst_58 : f32 to vector<8x1xf32>
    %146 = arith.mulf %144, %145 : vector<8x1xf32>
    %cst_59 = arith.constant 9.99999996E-13 : f32
    %147 = vector.broadcast %cst_59 : f32 to vector<8x1xf32>
    %148 = arith.addf %146, %147 : vector<8x1xf32>
    %149 = math.rsqrt %148 : vector<8x1xf32>
    %150 = vector.broadcast %149 : vector<8x1xf32> to vector<8x128xf32>
    %151 = arith.mulf %141, %150 : vector<8x128xf32>
    %152 = vector.broadcast %131 : vector<1x128xf32> to vector<8x128xf32>
    %153 = arith.mulf %151, %152 : vector<8x128xf32>
    %154 = vector.broadcast %133 : vector<1x128xf32> to vector<8x128xf32>
    %155 = arith.addf %153, %154 : vector<8x128xf32>
    %c0_60 = arith.constant 0 : index
    %c0_61 = arith.constant 0 : index
    %156 = vector.load %arg10[%c0_60, %c0_61] : memref<8x128xf32, #tpu.memory_space<vmem>>, vector<8x128xf32>
    tpu.vector_store %arg10[%c0_60, %c0_61], %155 {strides = array<i32>} : memref<8x128xf32, #tpu.memory_space<vmem>>, vector<8x128xf32>,
    %c1_i32 = arith.constant 1 : i32
    %157 = arith.cmpi eq, %arg1, %c1_i32 : i32
    %158 = arith.extui %157 : i1 to i32
    %c0_i32_62 = arith.constant 0 : i32
    %159 = arith.cmpi ne, %158, %c0_i32_62 : i32
    scf.if %159 {
      %c0_63 = arith.constant 0 : index
      %c0_64 = arith.constant 0 : index
      %c0_65 = arith.constant 0 : index
      %160 = vector.load %arg9[%c0_63, %c0_64, %c0_65] : memref<1x8x128xf32, #tpu.memory_space<vmem>>, vector<1x8x128xf32>
      %161 = vector.shape_cast %160 : vector<1x8x128xf32> to vector<8x128xf32>
      %162 = vector.shape_cast %155 : vector<8x128xf32> to vector<1x8x128xf32>
      tpu.vector_store %arg9[%c0_63, %c0_64, %c0_65], %162 {strides = array<i32>} : memref<1x8x128xf32, #tpu.memory_space<vmem>>, vector<1x8x128xf32>,
    } else {
    }
    return
  }
  func.func @transform_0(%arg0: i32, %arg1: i32) -> (i32, i32, i32) {
    %c0_i32 = arith.constant 0 : i32
    %c0_i32_0 = arith.constant 0 : i32
    %c0_i32_1 = arith.constant 0 : i32
    return %arg0, %c0_i32, %c0_i32_0 : i32, i32, i32
  }
  func.func @transform_1(%arg0: i32, %arg1: i32) -> (i32, i32) {
    %c0_i32 = arith.constant 0 : i32
    %c0_i32_0 = arith.constant 0 : i32
    %c0_i32_1 = arith.constant 0 : i32
    return %c0_i32, %c0_i32_0 : i32, i32
  }
  func.func @transform_2(%arg0: i32, %arg1: i32) -> (i32, i32, i32) {
    %c0_i32 = arith.constant 0 : i32
    %c0_i32_0 = arith.constant 0 : i32
    %c0_i32_1 = arith.constant 0 : i32
    return %arg1, %c0_i32, %c0_i32_0 : i32, i32, i32
  }
  func.func @transform_3(%arg0: i32, %arg1: i32) -> (i32, i32, i32) {
    %c0_i32 = arith.constant 0 : i32
    %c0_i32_0 = arith.constant 0 : i32
    %c0_i32_1 = arith.constant 0 : i32
    return %arg1, %c0_i32, %c0_i32_0 : i32, i32, i32
  }
  func.func @transform_4(%arg0: i32, %arg1: i32) -> (i32, i32, i32) {
    %c0_i32 = arith.constant 0 : i32
    %c0_i32_0 = arith.constant 0 : i32
    %c0_i32_1 = arith.constant 0 : i32
    return %arg1, %c0_i32, %c0_i32_0 : i32, i32, i32
  }
  func.func @transform_5(%arg0: i32, %arg1: i32) -> (i32, i32, i32) {
    %c0_i32 = arith.constant 0 : i32
    %c0_i32_0 = arith.constant 0 : i32
    %c0_i32_1 = arith.constant 0 : i32
    return %arg1, %c0_i32, %c0_i32_0 : i32, i32, i32
  }
  func.func @transform_6(%arg0: i32, %arg1: i32) -> (i32, i32, i32) {
    %c0_i32 = arith.constant 0 : i32
    %c0_i32_0 = arith.constant 0 : i32
    %c0_i32_1 = arith.constant 0 : i32
    return %arg1, %c0_i32, %c0_i32_0 : i32, i32, i32
  }
  func.func @transform_7(%arg0: i32, %arg1: i32) -> (i32, i32, i32) {
    %c0_i32 = arith.constant 0 : i32
    %c0_i32_0 = arith.constant 0 : i32
    %c0_i32_1 = arith.constant 0 : i32
    return %arg0, %c0_i32, %c0_i32_0 : i32, i32, i32
  }
}

</mosaic_0001>

<llo_original>
// kernel: hf_text_encoder_forward.1
$region0: #{hf_text_encoder_forward.1}
  #allocation0 [shape = 'u32[]', space=smem, size = 0x4, offset = 0x4, fixed_abs, tag = 'smem constant byte address 0x4 - core index']
  #allocation1 [shape = 'u32[72,128]{1,0:T(1,128)}', space=vmem, size = 0x9000, scoped, tag = 'internal scratch']
  #allocation2 [shape = 'f32[8,128]{1,0:T(8,128)}', space=vmem, size = 0x1000, scoped, tag = 'scratch operand']
  %s0 = inlined_call_operand.vmem [shape: f32[2,8,128], index: 0, kind: input, shape index: {}]
  %s1 = inlined_call_operand.vmem [shape: f32[8,128], index: 1, kind: input, shape index: {}]
  %s2 = inlined_call_operand.hbm [shape: f32[2,128,384], index: 2, kind: input, shape index: {}]
  %s3 = inlined_call_operand.vmem [shape: f32[2,128,128], index: 3, kind: input, shape index: {}]
  %s4 = inlined_call_operand.hbm [shape: f32[2,128,128], index: 4, kind: input, shape index: {}]
  %s5 = inlined_call_operand.hbm [shape: f32[2,128,128], index: 5, kind: input, shape index: {}]
  %s6 = inlined_call_operand.vmem [shape: f32[2,8,384], index: 6, kind: input, shape index: {}]
  %s7 = inlined_call_operand.vmem [shape: f32[2,8,128], index: 7, kind: output, shape index: {}]
  %s8 = sld [smem:[#allocation0]]
  $region81: #{hf_text_encoder_forward.1} parent=0
    _
  %s10 = ssub.s32 1, %s8
  %s11 = scalar_select 0, %s10, %s8
  $region1: #{hf_text_encoder_forward.1} parent=0
    #allocation3 [shape = 'u8[393216]{0}', space=vmem, size = 0x60000, scoped, tag = 'input window, operand 2']
    #allocation4 [shape = 's32[2]{0}', space=sflag, size = 0x8, scoped, tag = 'scoped memory for hf_text_encoder_forward.1']
    #allocation5 [shape = 'u8[131072]{0}', space=vmem, size = 0x20000, scoped, tag = 'input window, operand 4']
    #allocation6 [shape = 's32[2]{0}', space=sflag, size = 0x8, scoped, tag = 'scoped memory for hf_text_encoder_forward.1']
    #allocation7 [shape = 'u8[131072]{0}', space=vmem, size = 0x20000, scoped, tag = 'input window, operand 5']
    %12 = vsyncpa [#allocation4], 0
    %s13 = scalar_lea.sflag [#allocation4], 1
    %14 = vsyncpa %s13, 0
    %15 = vsyncpa [#allocation6], 0
    %s16 = scalar_lea.sflag [#allocation6], 1
    %17 = vsyncpa %s16, 0
    loop: start=0, step=1, limit=6
    $region2: #{hf_text_encoder_forward.1} parent=1 // loop_pre_header
      _
    $region3: #{hf_text_encoder_forward.1} parent=1 // loop_header
      %s19 = sphi 0, %s23
      %p20 = scmp.ge.s32.totalorder %s19, 6
      %s26 = sphi 0, %s38
      %s27 = sphi 0, %s34
      %s28 = sphi 0, %s26
      %s29 = sphi 0, %s27
      %s30 = sphi 0, %s28
      %s31 = sphi 0, %s29
      %s41 = sphi 0, %s43
      %s44 = sphi 0, %s41
      %s45 = sphi 0, %s44
      %s61 = sphi 0, %s45
      %s65 = sphi 0, %s65
      %s67 = sphi 0, %s65
      %s68 = sphi 0, %s67
      %s82 = sphi 0, %s68
      %s88 = sphi 0, %s90
      %s91 = sphi 0, %s88
      %s92 = sphi 0, %s91
      %s108 = sphi 0, %s92
      %s114 = sphi 0, %s116
      %s117 = sphi 0, %s114
      %s118 = sphi 0, %s117
      %s134 = sphi 0, %s118
      %s140 = sphi 0, %s142
      %s143 = sphi 0, %s140
      %s144 = sphi 0, %s143
      %s160 = sphi 0, %s144
      %s166 = sphi 0, %s168
      %s169 = sphi 0, %s166
      %s170 = sphi 0, %s169
      %s186 = sphi 0, %s170
      %s192 = sphi 0, %s194
      %s195 = sphi 0, %s192
      %s196 = sphi 0, %s195
      %s212 = sphi 0, %s196
      %s218 = sphi 0, %s220
      %s221 = sphi 0, %s218
      %s222 = sphi 0, %s221
      %s238 = sphi 0, %s222
    $region4: #{hf_text_encoder_forward.1} parent=1 // loop_header_branch
      %22 = sbr.rel (%p20) target = $region8
    $region5: #{hf_text_encoder_forward.1} parent=1 // loop_body
      %s24 = ssub.s32 %s19, 1
      %s25 = ssub.s32 %s19, 2
      %s32 = sadd.s32 1, %s27
      %p33 = scmp.ge.s32.totalorder %s32, 2
      %s34 = scalar_select %p33, 0, %s32
      %s35 = sadd.s32 1, %s26
      %s36 = scalar_select %p33, %s35, %s26
      %p37 = scmp.ge.s32.totalorder %s36, 2
      %s38 = scalar_select %p37, 0, %s36
      %s39 = ssub.s32 %s26, %s38
      %p40 = scmp.eq.s32.totalorder %s39, 0
      %s42 = sadd.s32 %s41, 1
      %s43 = scalar_select %p40, %s41, %s42
      %p46 = pneg %p40
      %p47 = scmp.eq.s32.totalorder %s19, 3
      %p48 = por %p46, %p47
      %p49 = scmp.ne.s32.totalorder %s41, %s44
      %p50 = scmp.eq.s32.totalorder %s19, 0
      %p51 = por %p49, %p50
      %p52 = scmp.ne.s32.totalorder %s41, %s44
      %p53 = scmp.eq.s32.totalorder %s24, 3
      %p54 = por %p52, %p53
      %p55 = scmp.ne.s32.totalorder %s44, %s45
      %p56 = scmp.eq.s32.totalorder %s24, 0
      %p57 = por %p55, %p56
      %p58 = scmp.ne.s32.totalorder %s44, %s45
      %p59 = scmp.eq.s32.totalorder %s25, 3
      %p60 = por %p58, %p59
      %p62 = scmp.ne.s32.totalorder %s45, %s61
      %p63 = scmp.eq.s32.totalorder %s25, 0
      %p64 = por %p62, %p63
      %s66 = sadd.s32 %s65, 1
      %p69 = scmp.eq.s32.totalorder %s19, 3
      %p70 = scmp.ne.s32.totalorder %s65, %s67
      %p71 = scmp.eq.s32.totalorder %s19, 0
      %p72 = por %p70, %p71
      %p73 = scmp.ne.s32.totalorder %s65, %s67
      %p74 = scmp.eq.s32.totalorder %s24, 3
      %p75 = por %p73, %p74
      %p76 = scmp.ne.s32.totalorder %s67, %s68
      %p77 = scmp.eq.s32.totalorder %s24, 0
      %p78 = por %p76, %p77
      %p79 = scmp.ne.s32.totalorder %s67, %s68
      %p80 = scmp.eq.s32.totalorder %s25, 3
      %p81 = por %p79, %p80
      %p83 = scmp.ne.s32.totalorder %s68, %s82
      %p84 = scmp.eq.s32.totalorder %s25, 0
      %p85 = por %p83, %p84
      %s86 = ssub.s32 %s27, %s34
      %p87 = scmp.eq.s32.totalorder %s86, 0
      %s89 = sadd.s32 %s88, 1
      %s90 = scalar_select %p87, %s88, %s89
      %p93 = pneg %p87
      %p94 = scmp.eq.s32.totalorder %s19, 3
      %p95 = por %p93, %p94
      %p96 = scmp.ne.s32.totalorder %s88, %s91
      %p97 = scmp.eq.s32.totalorder %s19, 0
      %p98 = por %p96, %p97
      %p99 = scmp.ne.s32.totalorder %s88, %s91
      %p100 = scmp.eq.s32.totalorder %s24, 3
      %p101 = por %p99, %p100
      %p102 = scmp.ne.s32.totalorder %s91, %s92
      %p103 = scmp.eq.s32.totalorder %s24, 0
      %p104 = por %p102, %p103
      %p105 = scmp.ne.s32.totalorder %s91, %s92
      %p106 = scmp.eq.s32.totalorder %s25, 3
      %p107 = por %p105, %p106
      %p109 = scmp.ne.s32.totalorder %s92, %s108
      %p110 = scmp.eq.s32.totalorder %s25, 0
      %p111 = por %p109, %p110
      %s112 = ssub.s32 %s27, %s34
      %p113 = scmp.eq.s32.totalorder %s112, 0
      %s115 = sadd.s32 %s114, 1
      %s116 = scalar_select %p113, %s114, %s115
      %p119 = pneg %p113
      %p120 = scmp.eq.s32.totalorder %s19, 3
      %p121 = por %p119, %p120
      %p122 = scmp.ne.s32.totalorder %s114, %s117
      %p123 = scmp.eq.s32.totalorder %s19, 0
      %p124 = por %p122, %p123
      %p125 = scmp.ne.s32.totalorder %s114, %s117
      %p126 = scmp.eq.s32.totalorder %s24, 3
      %p127 = por %p125, %p126
      %p128 = scmp.ne.s32.totalorder %s117, %s118
      %p129 = scmp.eq.s32.totalorder %s24, 0
      %p130 = por %p128, %p129
      %p131 = scmp.ne.s32.totalorder %s117, %s118
      %p132 = scmp.eq.s32.totalorder %s25, 3
      %p133 = por %p131, %p132
      %p135 = scmp.ne.s32.totalorder %s118, %s134
      %p136 = scmp.eq.s32.totalorder %s25, 0
      %p137 = por %p135, %p136
      %s138 = ssub.s32 %s27, %s34
      %p139 = scmp.eq.s32.totalorder %s138, 0
      %s141 = sadd.s32 %s140, 1
      %s142 = scalar_select %p139, %s140, %s141
      %p145 = pneg %p139
      %p146 = scmp.eq.s32.totalorder %s19, 3
      %p147 = por %p145, %p146
      %p148 = scmp.ne.s32.totalorder %s140, %s143
      %p149 = scmp.eq.s32.totalorder %s19, 0
      %p150 = por %p148, %p149
      %p151 = scmp.ne.s32.totalorder %s140, %s143
      %p152 = scmp.eq.s32.totalorder %s24, 3
      %p153 = por %p151, %p152
      %p154 = scmp.ne.s32.totalorder %s143, %s144
      %p155 = scmp.eq.s32.totalorder %s24, 0
      %p156 = por %p154, %p155
      %p157 = scmp.ne.s32.totalorder %s143, %s144
      %p158 = scmp.eq.s32.totalorder %s25, 3
      %p159 = por %p157, %p158
      %p161 = scmp.ne.s32.totalorder %s144, %s160
      %p162 = scmp.eq.s32.totalorder %s25, 0
      %p163 = por %p161, %p162
      %s164 = ssub.s32 %s27, %s34
      %p165 = scmp.eq.s32.totalorder %s164, 0
      %s167 = sadd.s32 %s166, 1
      %s168 = scalar_select %p165, %s166, %s167
      %p171 = pneg %p165
      %p172 = scmp.eq.s32.totalorder %s19, 3
      %p173 = por %p171, %p172
      %p174 = scmp.ne.s32.totalorder %s166, %s169
      %p175 = scmp.eq.s32.totalorder %s19, 0
      %p176 = por %p174, %p175
      %p177 = scmp.ne.s32.totalorder %s166, %s169
      %p178 = scmp.eq.s32.totalorder %s24, 3
      %p179 = por %p177, %p178
      %p180 = scmp.ne.s32.totalorder %s169, %s170
      %p181 = scmp.eq.s32.totalorder %s24, 0
      %p182 = por %p180, %p181
      %p183 = scmp.ne.s32.totalorder %s169, %s170
      %p184 = scmp.eq.s32.totalorder %s25, 3
      %p185 = por %p183, %p184
      %p187 = scmp.ne.s32.totalorder %s170, %s186
      %p188 = scmp.eq.s32.totalorder %s25, 0
      %p189 = por %p187, %p188
      %s190 = ssub.s32 %s27, %s34
      %p191 = scmp.eq.s32.totalorder %s190, 0
      %s193 = sadd.s32 %s192, 1
      %s194 = scalar_select %p191, %s192, %s193
      %p197 = pneg %p191
      %p198 = scmp.eq.s32.totalorder %s19, 3
      %p199 = por %p197, %p198
      %p200 = scmp.ne.s32.totalorder %s192, %s195
      %p201 = scmp.eq.s32.totalorder %s19, 0
      %p202 = por %p200, %p201
      %p203 = scmp.ne.s32.totalorder %s192, %s195
      %p204 = scmp.eq.s32.totalorder %s24, 3
      %p205 = por %p203, %p204
      %p206 = scmp.ne.s32.totalorder %s195, %s196
      %p207 = scmp.eq.s32.totalorder %s24, 0
      %p208 = por %p206, %p207
      %p209 = scmp.ne.s32.totalorder %s195, %s196
      %p210 = scmp.eq.s32.totalorder %s25, 3
      %p211 = por %p209, %p210
      %p213 = scmp.ne.s32.totalorder %s196, %s212
      %p214 = scmp.eq.s32.totalorder %s25, 0
      %p215 = por %p213, %p214
      %s216 = ssub.s32 %s26, %s38
      %p217 = scmp.eq.s32.totalorder %s216, 0
      %s219 = sadd.s32 %s218, 1
      %s220 = scalar_select %p217, %s218, %s219
      %p223 = pneg %p217
      %p224 = scmp.eq.s32.totalorder %s19, 3
      %p225 = por %p223, %p224
      %p226 = scmp.ne.s32.totalorder %s218, %s221
      %p227 = scmp.eq.s32.totalorder %s19, 0
      %p228 = por %p226, %p227
      %p229 = scmp.ne.s32.totalorder %s218, %s221
      %p230 = scmp.eq.s32.totalorder %s24, 3
      %p231 = por %p229, %p230
      %p232 = scmp.ne.s32.totalorder %s221, %s222
      %p233 = scmp.eq.s32.totalorder %s24, 0
      %p234 = por %p232, %p233
      %p235 = scmp.ne.s32.totalorder %s221, %s222
      %p236 = scmp.eq.s32.totalorder %s25, 3
      %p237 = por %p235, %p236
      %p239 = scmp.ne.s32.totalorder %s222, %s238
      %p240 = scmp.eq.s32.totalorder %s25, 0
      %p241 = por %p239, %p240
      %p242 = scmp.le.s32.totalorder 1, %s19
      %p243 = scmp.lt.s32.totalorder %s19, 5
      %p244 = pnand %p242, %p243
      %p245 = pneg %p244
      // Predicated region
      $region9: #{hf_text_encoder_forward.1} parent=5 // pred_check
        _
      $region10: #{hf_text_encoder_forward.1} parent=5 // pred_check_branch
        %247 = sbr.rel (%p244) target = $region12
      $region11: #{hf_text_encoder_forward.1} parent=5 // pred_region
        %s248 = ssub.s32 %s19, 1
        // Predicated region
        $region13: #{hf_text_encoder_forward.1} parent=11 // pred_check
          %p249 = pneg %p78
        $region14: #{hf_text_encoder_forward.1} parent=11 // pred_check_branch
          %251 = sbr.rel (%p249) target = $region16
        $region15: #{hf_text_encoder_forward.1} parent=11 // pred_region
          _
        $region16: #{hf_text_encoder_forward.1} parent=11 // pred_fallthru
          _
      $region12: #{hf_text_encoder_forward.1} parent=5 // pred_fallthru
        _
      %p252 = scmp.lt.s32.totalorder %s19, 4
      // Predicated region
      $region17: #{hf_text_encoder_forward.1} parent=5 // pred_check
        %p253 = pneg %p252
      $region18: #{hf_text_encoder_forward.1} parent=5 // pred_check_branch
        %255 = sbr.rel (%p253) target = $region20
      $region19: #{hf_text_encoder_forward.1} parent=5 // pred_region
        // Predicated region
        $region21: #{hf_text_encoder_forward.1} parent=19 // pred_check
          %p256 = pneg %p51
        $region22: #{hf_text_encoder_forward.1} parent=19 // pred_check_branch
          %258 = sbr.rel (%p256) target = $region24
        $region23: #{hf_text_encoder_forward.1} parent=19 // pred_region
          %p259 = scmp.lt.s32.totalorder %s26, 1
          %s260 = scalar_select %p259, %s26, 1
          %s261 = smul.addr %s260, 8
          %s262 = scalar_lea.vmem %s0, %s261
        $region24: #{hf_text_encoder_forward.1} parent=19 // pred_fallthru
          _
        // Predicated region
        $region25: #{hf_text_encoder_forward.1} parent=19 // pred_check
          %p263 = pneg %p98
        $region26: #{hf_text_encoder_forward.1} parent=19 // pred_check_branch
          %265 = sbr.rel (%p263) target = $region28
        $region27: #{hf_text_encoder_forward.1} parent=19 // pred_region
          %s266 = sand.u32 %s88, 1
          %s267 = scalar_lea.sflag [#allocation4], %s266
          %s268 = sand.u32 %s88, 1
          %s269 = smul.addr %s268, 384
          %s270 = scalar_lea.vmem [#allocation3], %s269
          %272 = vsyncadd %s267, 0
          %s273 = smul.addr %s27, 48
          %s274 = smul.addr %s273, 8
          %s275 = scalar_lea.hbm %s2, %s274
          %s276 = sshll.u32 %s275, 4
          %s277 = int_to_ptr.hbm [resolvable:$true] %s276
          %s278 = sshll.u32 %s270, 4
          %s279 = int_to_ptr.vmem [resolvable:$true] %s278
          %284 = dma.hbm_to_vmem [thread:$0]  %s277, 6144, %s279, %s267, 384, 384, 24
        $region28: #{hf_text_encoder_forward.1} parent=19 // pred_fallthru
          _
        // Predicated region
        $region29: #{hf_text_encoder_forward.1} parent=19 // pred_check
          %p285 = pneg %p124
        $region30: #{hf_text_encoder_forward.1} parent=19 // pred_check_branch
          %287 = sbr.rel (%p285) target = $region32
        $region31: #{hf_text_encoder_forward.1} parent=19 // pred_region
          %p288 = scmp.lt.s32.totalorder %s27, 1
          %s289 = scalar_select %p288, %s27, 1
          %s290 = smul.addr %s289, 16
          %s291 = smul.addr %s290, 8
          %s292 = scalar_lea.vmem %s3, %s291
        $region32: #{hf_text_encoder_forward.1} parent=19 // pred_fallthru
          _
        // Predicated region
        $region33: #{hf_text_encoder_forward.1} parent=19 // pred_check
          %p293 = pneg %p150
        $region34: #{hf_text_encoder_forward.1} parent=19 // pred_check_branch
          %295 = sbr.rel (%p293) target = $region36
        $region35: #{hf_text_encoder_forward.1} parent=19 // pred_region
          %s296 = sand.u32 %s19, 1
          %s297 = scalar_lea.sflag [#allocation6], %s296
          %s298 = sand.u32 %s140, 1
          %s299 = smul.addr %s298, 128
          %s300 = scalar_lea.vmem [#allocation5], %s299
          %302 = vsyncadd %s297, 0
          %s303 = smul.addr %s27, 16
          %s304 = smul.addr %s303, 8
          %s305 = scalar_lea.hbm %s4, %s304
          %s306 = sshll.u32 %s305, 4
          %s307 = int_to_ptr.hbm [resolvable:$true] %s306
          %s308 = sshll.u32 %s300, 4
          %s309 = int_to_ptr.vmem [resolvable:$true] %s308
          %314 = dma.hbm_to_vmem [thread:$0]  %s307, 2048, %s309, %s297, 128, 128, 8
        $region36: #{hf_text_encoder_forward.1} parent=19 // pred_fallthru
          _
        // Predicated region
        $region37: #{hf_text_encoder_forward.1} parent=19 // pred_check
          %p315 = pneg %p176
        $region38: #{hf_text_encoder_forward.1} parent=19 // pred_check_branch
          %317 = sbr.rel (%p315) target = $region40
        $region39: #{hf_text_encoder_forward.1} parent=19 // pred_region
          %s318 = sand.u32 %s19, 1
          %s319 = scalar_lea.sflag [#allocation6], %s318
          %s320 = sand.u32 %s166, 1
          %s321 = smul.addr %s320, 128
          %s322 = scalar_lea.vmem [#allocation7], %s321
          %324 = vsyncadd %s319, 0
          %s325 = smul.addr %s27, 16
          %s326 = smul.addr %s325, 8
          %s327 = scalar_lea.hbm %s5, %s326
          %s328 = sshll.u32 %s327, 4
          %s329 = int_to_ptr.hbm [resolvable:$true] %s328
          %s330 = sshll.u32 %s322, 4
          %s331 = int_to_ptr.vmem [resolvable:$true] %s330
          %336 = dma.hbm_to_vmem [thread:$0]  %s329, 2048, %s331, %s319, 128, 128, 8
        $region40: #{hf_text_encoder_forward.1} parent=19 // pred_fallthru
          _
        // Predicated region
        $region41: #{hf_text_encoder_forward.1} parent=19 // pred_check
          %p337 = pneg %p202
        $region42: #{hf_text_encoder_forward.1} parent=19 // pred_check_branch
          %339 = sbr.rel (%p337) target = $region44
        $region43: #{hf_text_encoder_forward.1} parent=19 // pred_region
          %p340 = scmp.lt.s32.totalorder %s27, 1
          %s341 = scalar_select %p340, %s27, 1
          %s342 = smul.addr %s341, 3
          %s343 = smul.addr %s342, 8
          %s344 = scalar_lea.vmem %s6, %s343
        $region44: #{hf_text_encoder_forward.1} parent=19 // pred_fallthru
          _
      $region20: #{hf_text_encoder_forward.1} parent=5 // pred_fallthru
        _
      %p345 = scmp.le.s32.totalorder 1, %s19
      %p346 = scmp.lt.s32.totalorder %s19, 5
      %p347 = pnand %p345, %p346
      %p348 = pneg %p347
      // Predicated region
      $region45: #{hf_text_encoder_forward.1} parent=5 // pred_check
        _
      $region46: #{hf_text_encoder_forward.1} parent=5 // pred_check_branch
        %350 = sbr.rel (%p347) target = $region48
      $region47: #{hf_text_encoder_forward.1} parent=5 // pred_region
        %s351 = ssub.s32 %s19, 1
        %s352 = sand.u32 %s91, 1
        %s353 = scalar_lea.sflag [#allocation4], %s352
        %s354 = sand.u32 %s91, 1
        %s355 = smul.addr %s354, 384
        %s356 = scalar_lea.vmem [#allocation3], %s355
        // Predicated region
        $region49: #{hf_text_encoder_forward.1} parent=47 // pred_check
          %p357 = pneg %p104
        $region50: #{hf_text_encoder_forward.1} parent=47 // pred_check_branch
          %359 = sbr.rel (%p357) target = $region52
        $region51: #{hf_text_encoder_forward.1} parent=47 // pred_region
          %361 = dma.done %s353, 6144
        $region52: #{hf_text_encoder_forward.1} parent=47 // pred_fallthru
          _
        %s362 = sand.u32 %s24, 1
        %s363 = scalar_lea.sflag [#allocation6], %s362
        %s364 = sand.u32 %s143, 1
        %s365 = smul.addr %s364, 128
        %s366 = scalar_lea.vmem [#allocation5], %s365
        // Predicated region
        $region53: #{hf_text_encoder_forward.1} parent=47 // pred_check
          %p367 = pneg %p156
        $region54: #{hf_text_encoder_forward.1} parent=47 // pred_check_branch
          %369 = sbr.rel (%p367) target = $region56
        $region55: #{hf_text_encoder_forward.1} parent=47 // pred_region
          %371 = dma.done %s363, 2048
        $region56: #{hf_text_encoder_forward.1} parent=47 // pred_fallthru
          _
        %s372 = sand.u32 %s24, 1
        %s373 = scalar_lea.sflag [#allocation6], %s372
        %s374 = sand.u32 %s169, 1
        %s375 = smul.addr %s374, 128
        %s376 = scalar_lea.vmem [#allocation7], %s375
        // Predicated region
        $region57: #{hf_text_encoder_forward.1} parent=47 // pred_check
          %p377 = pneg %p182
        $region58: #{hf_text_encoder_forward.1} parent=47 // pred_check_branch
          %379 = sbr.rel (%p377) target = $region60
        $region59: #{hf_text_encoder_forward.1} parent=47 // pred_region
          %381 = dma.done %s373, 2048
        $region60: #{hf_text_encoder_forward.1} parent=47 // pred_fallthru
          _
        %p382 = scmp.lt.s32.totalorder %s28, 1
        %s383 = scalar_select %p382, %s28, 1
        %s384 = smul.addr %s383, 8
        %s385 = scalar_lea.vmem %s0, %s384
        %p386 = pneg %p57
        %p387 = pneg %p54
        %p388 = pneg %p78
        %p389 = pneg %p75
        %s390 = sand.u32 %s91, 1
        %s391 = scalar_lea.sflag [#allocation4], %s390
        %s392 = sand.u32 %s91, 1
        %s393 = smul.addr %s392, 384
        %s394 = scalar_lea.vmem [#allocation3], %s393
        %p395 = pneg %p104
        %p396 = pneg %p101
        %p397 = scmp.lt.s32.totalorder %s29, 1
        %s398 = scalar_select %p397, %s29, 1
        %s399 = smul.addr %s398, 16
        %s400 = smul.addr %s399, 8
        %s401 = scalar_lea.vmem %s3, %s400
        %p402 = pneg %p130
        %p403 = pneg %p127
        %s404 = sand.u32 %s24, 1
        %s405 = scalar_lea.sflag [#allocation6], %s404
        %s406 = sand.u32 %s143, 1
        %s407 = smul.addr %s406, 128
        %s408 = scalar_lea.vmem [#allocation5], %s407
        %p409 = pneg %p156
        %p410 = pneg %p153
        %s411 = sand.u32 %s24, 1
        %s412 = scalar_lea.sflag [#allocation6], %s411
        %s413 = sand.u32 %s169, 1
        %s414 = smul.addr %s413, 128
        %s415 = scalar_lea.vmem [#allocation7], %s414
        %p416 = pneg %p182
        %p417 = pneg %p179
        %p418 = scmp.lt.s32.totalorder %s29, 1
        %s419 = scalar_select %p418, %s29, 1
        %s420 = smul.addr %s419, 3
        %s421 = smul.addr %s420, 8
        %s422 = scalar_lea.vmem %s6, %s421
        %p423 = pneg %p208
        %p424 = pneg %p205
        %p425 = pneg %p234
        %p426 = pneg %p231
        %p427 = scmp.lt.s32.totalorder %s28, 1
        %s428 = scalar_select %p427, %s28, 1
        %s429 = smul.addr %s428, 8
        %s430 = scalar_lea.vmem %s7, %s429
        %p431 = scmp.lt.s32.totalorder %s28, 1
        %s432 = scalar_select %p431, %s28, 1
        %s433 = smul.addr %s432, 8
        %s434 = scalar_lea.vmem %s0, %s433
        %p435 = scmp.lt.s32.totalorder %s29, 1
        %s436 = scalar_select %p435, %s29, 1
        %s437 = smul.addr %s436, 16
        %s438 = smul.addr %s437, 8
        %s439 = scalar_lea.vmem %s3, %s438
        %p440 = scmp.lt.s32.totalorder %s29, 1
        %s441 = scalar_select %p440, %s29, 1
        %s442 = smul.addr %s441, 3
        %s443 = smul.addr %s442, 8
        %s444 = scalar_lea.vmem %s6, %s443
        %p445 = scmp.lt.s32.totalorder %s28, 1
        %s446 = scalar_select %p445, %s28, 1
        %s447 = smul.addr %s446, 8
        %s448 = scalar_lea.vmem %s7, %s447
        %v449 = vlaneseq
        %v450 = vand.u32 %v449, 127
        %vm451 = vcmp.lt.s32.totalorder %v450, 32
        %v452 = vsel %vm451, 1, 0
        %v453 = vcvt.s32.f32 %v452
        %p454 = scmp.eq.s32.totalorder %s29, 0
        // Predicated region
        $region61: #{hf_text_encoder_forward.1} parent=47 // pred_check
          %p455 = pneg %p454
        $region62: #{hf_text_encoder_forward.1} parent=47 // pred_check_branch
          %457 = sbr.rel (%p455) target = $region64
        $region63: #{hf_text_encoder_forward.1} parent=47 // pred_region
          %v458 = vld [vmem:[%s434] sm:$0xff]
          %v459 = vld [vmem:[%s1] sm:$0x1]
          %v460 = vld [vmem:[%s1 + $0x1] sm:$0x1]
          %461 = vadd.xlane.f32.xlu0 %v458
          %v462 = vpop.xlane.xlu0 %461
          %v463 = vmul.f32 %v462, 0.03125
          %v464 = vsub.f32 %v458, %v463
          %v465 = vmul.f32 %v464, %v453
          %v466 = vmul.f32 %v465, %v465
          %467 = vadd.xlane.f32.xlu0 %v466
          %v468 = vpop.xlane.xlu0 %467
          %v469 = vmul.f32 %v468, 0.03125
          %v470 = vadd.f32 %v469, 1e-12
          %v471 = vrsqrt.pop %v470
          %v472 = vmul.f32 %v471, %v470
          %v473 = vmul.f32 %v472, %v471
          %v474 = vmul.f32 0.5, %v473
          %v475 = vsub.f32 1.5, %v474
          %v476 = vmul.f32 %v471, %v475
          %vm477 = vweird.f32 %v470
          %vm478 = vweird.f32 %v471
          %vm479 = vmor %vm477, %vm478
          %v480 = vsel %vm479, %v471, %v476
          %v481 = vmul.f32 %v465, %v480
          %v482 = vperm.slane %v459, 0
          %v483 = vmul.f32 %v481, %v482
          %v484 = vperm.slane %v460, 0
          %v485 = vadd.f32 %v483, %v484
          %486 = vst [vmem:[#allocation2] sm:$0xff] %v485
        $region64: #{hf_text_encoder_forward.1} parent=47 // pred_fallthru
          _
        %v487 = vld [vmem:[#allocation2] sm:$0xff]
        %v488 = vld [vmem:[%s356] sm:$0xff]
        %v489 = vld [vmem:[%s356 + $0x8] sm:$0xff]
        %v490 = vld [vmem:[%s356 + $0x10] sm:$0xff]
        %v491 = vld [vmem:[%s356 + $0x18] sm:$0xff]
        %v492 = vld [vmem:[%s356 + $0x20] sm:$0xff]
        %v493 = vld [vmem:[%s356 + $0x28] sm:$0xff]
        %v494 = vld [vmem:[%s356 + $0x30] sm:$0xff]
        %v495 = vld [vmem:[%s356 + $0x38] sm:$0xff]
        %v496 = vld [vmem:[%s356 + $0x40] sm:$0xff]
        %v497 = vld [vmem:[%s356 + $0x48] sm:$0xff]
        %v498 = vld [vmem:[%s356 + $0x50] sm:$0xff]
        %v499 = vld [vmem:[%s356 + $0x58] sm:$0xff]
        %v500 = vld [vmem:[%s356 + $0x60] sm:$0xff]
        %v501 = vld [vmem:[%s356 + $0x68] sm:$0xff]
        %v502 = vld [vmem:[%s356 + $0x70] sm:$0xff]
        %v503 = vld [vmem:[%s356 + $0x78] sm:$0xff]
        %v504 = vld [vmem:[%s356 + $0x80] sm:$0xff]
        %v505 = vld [vmem:[%s356 + $0x88] sm:$0xff]
        %v506 = vld [vmem:[%s356 + $0x90] sm:$0xff]
        %v507 = vld [vmem:[%s356 + $0x98] sm:$0xff]
        %v508 = vld [vmem:[%s356 + $0xa0] sm:$0xff]
        %v509 = vld [vmem:[%s356 + $0xa8] sm:$0xff]
        %v510 = vld [vmem:[%s356 + $0xb0] sm:$0xff]
        %v511 = vld [vmem:[%s356 + $0xb8] sm:$0xff]
        %v512 = vld [vmem:[%s356 + $0xc0] sm:$0xff]
        %v513 = vld [vmem:[%s356 + $0xc8] sm:$0xff]
        %v514 = vld [vmem:[%s356 + $0xd0] sm:$0xff]
        %v515 = vld [vmem:[%s356 + $0xd8] sm:$0xff]
        %v516 = vld [vmem:[%s356 + $0xe0] sm:$0xff]
        %v517 = vld [vmem:[%s356 + $0xe8] sm:$0xff]
        %v518 = vld [vmem:[%s356 + $0xf0] sm:$0xff]
        %v519 = vld [vmem:[%s356 + $0xf8] sm:$0xff]
        %v520 = vld [vmem:[%s356 + $0x100] sm:$0xff]
        %v521 = vld [vmem:[%s356 + $0x108] sm:$0xff]
        %v522 = vld [vmem:[%s356 + $0x110] sm:$0xff]
        %v523 = vld [vmem:[%s356 + $0x118] sm:$0xff]
        %v524 = vld [vmem:[%s356 + $0x120] sm:$0xff]
        %v525 = vld [vmem:[%s356 + $0x128] sm:$0xff]
        %v526 = vld [vmem:[%s356 + $0x130] sm:$0xff]
        %v527 = vld [vmem:[%s356 + $0x138] sm:$0xff]
        %v528 = vld [vmem:[%s356 + $0x140] sm:$0xff]
        %v529 = vld [vmem:[%s356 + $0x148] sm:$0xff]
        %v530 = vld [vmem:[%s356 + $0x150] sm:$0xff]
        %v531 = vld [vmem:[%s356 + $0x158] sm:$0xff]
        %v532 = vld [vmem:[%s356 + $0x160] sm:$0xff]
        %v533 = vld [vmem:[%s356 + $0x168] sm:$0xff]
        %v534 = vld [vmem:[%s356 + $0x170] sm:$0xff]
        %v535 = vld [vmem:[%s356 + $0x178] sm:$0xff]
        %v536 = vld [vmem:[%s444] ss:$8 sm:$0x7]
        %v538 = vperm.slane %v536, 0
        %v539 = vperm.slane %v536, 1
        %v540 = vperm.slane %v536, 2
        %544 = vmatpush.msra.mxu0 %v533
        %545 = vmatpush.msra.mxu0 %v530
        %546 = vmatpush.msra.mxu0 %v527
        %547 = vmatpush.msra.mxu0 %v524
        %548 = vmatpush.msra.mxu0 %v521
        %549 = vmatpush.msra.mxu0 %v518
        %550 = vmatpush.msra.mxu0 %v515
        %551 = vmatpush.msra.mxu0 %v512
        %552 = vmatpush.msra.mxu0 %v509
        %553 = vmatpush.msra.mxu0 %v506
        %554 = vmatpush.msra.mxu0 %v503
        %555 = vmatpush.msra.mxu0 %v500
        %556 = vmatpush.msra.mxu0 %v497
        %557 = vmatpush.msra.mxu0 %v494
        %558 = vmatpush.msra.mxu0 %v491
        %559 = vmatpush.msra.mxu0 %v488
        %560 = vmatmul.f32.gmra.mxu0 %v487
        %v561 = vpop.f32.mrf.mxu0
        %v562 = vadd.f32 %v538, %v561
        %563 = vdwg.mxu0
        %564 = vmatpush.msra.mxu0 %v534
        %565 = vmatpush.msra.mxu0 %v531
        %566 = vmatpush.msra.mxu0 %v528
        %567 = vmatpush.msra.mxu0 %v525
        %568 = vmatpush.msra.mxu0 %v522
        %569 = vmatpush.msra.mxu0 %v519
        %570 = vmatpush.msra.mxu0 %v516
        %571 = vmatpush.msra.mxu0 %v513
        %572 = vmatpush.msra.mxu0 %v510
        %573 = vmatpush.msra.mxu0 %v507
        %574 = vmatpush.msra.mxu0 %v504
        %575 = vmatpush.msra.mxu0 %v501
        %576 = vmatpush.msra.mxu0 %v498
        %577 = vmatpush.msra.mxu0 %v495
        %578 = vmatpush.msra.mxu0 %v492
        %579 = vmatpush.msra.mxu0 %v489
        %580 = vmatmul.f32.gmra.mxu0 %v487
        %v581 = vpop.f32.mrf.mxu0
        %v582 = vadd.f32 %v539, %v581
        %583 = vdwg.mxu0
        %584 = vmatpush.msra.mxu0 %v535
        %585 = vmatpush.msra.mxu0 %v532
        %586 = vmatpush.msra.mxu0 %v529
        %587 = vmatpush.msra.mxu0 %v526
        %588 = vmatpush.msra.mxu0 %v523
        %589 = vmatpush.msra.mxu0 %v520
        %590 = vmatpush.msra.mxu0 %v517
        %591 = vmatpush.msra.mxu0 %v514
        %592 = vmatpush.msra.mxu0 %v511
        %593 = vmatpush.msra.mxu0 %v508
        %594 = vmatpush.msra.mxu0 %v505
        %595 = vmatpush.msra.mxu0 %v502
        %596 = vmatpush.msra.mxu0 %v499
        %597 = vmatpush.msra.mxu0 %v496
        %598 = vmatpush.msra.mxu0 %v493
        %599 = vmatpush.msra.mxu0 %v490
        %600 = vmatmul.f32.gmra.mxu0 %v487
        %v601 = vpop.f32.mrf.mxu0
        %v602 = vadd.f32 %v540, %v601
        %603 = vdwg.mxu0
        %vm604 = vcmp.ge.s32.totalorder %v450, 0
        %vm605 = vcmp.lt.s32.totalorder %v450, 16
        %vm606 = vmand %vm604, %vm605
        %v607 = vsel %vm606, 1, 0
        %v608 = vcvt.s32.f32 %v607
        %v609 = vmul.f32 %v562, %v608
        %610 = vmatpush.xpose.msra.mxu0 0.0
        %611 = vmatpush.xpose.msra.mxu0 0.0
        %612 = vmatpush.xpose.msra.mxu0 0.0
        %613 = vmatpush.xpose.msra.mxu0 0.0
        %614 = vmatpush.xpose.msra.mxu0 0.0
        %615 = vmatpush.xpose.msra.mxu0 0.0
        %616 = vmatpush.xpose.msra.mxu0 0.0
        %617 = vmatpush.xpose.msra.mxu0 0.0
        %618 = vmatpush.xpose.msra.mxu0 0.0
        %619 = vmatpush.xpose.msra.mxu0 0.0
        %620 = vmatpush.xpose.msra.mxu0 0.0
        %621 = vmatpush.xpose.msra.mxu0 0.0
        %622 = vmatpush.xpose.msra.mxu0 0.0
        %623 = vmatpush.xpose.msra.mxu0 0.0
        %624 = vmatpush.xpose.msra.mxu0 0.0
        %625 = vmatpush.xpose.msra.mxu0 %v582
        %626 = vmatmul.f32.gmra.mxu0 %v609
        %v627 = vpop.f32.mrf.mxu0
        %v628 = vadd.f32 0.0, %v627
        %629 = vdwg.mxu0
        %vm630 = vcmask 64512
        %v631 = vsel %vm630, %v628, -inf
        %632 = vmax.xlane.f32.xlu0 %v631
        %v633 = vpop.xlane.xlu0 %632
        %v634 = vsub.f32 %v628, %v633
        %v635 = vmul.f32 %v634, 1.442695
        %v636 = vpow.pop %v635
        %v637 = vsel %vm630, %v636, 0.0
        %638 = vadd.xlane.f32.xlu0 %v637
        %v639 = vpop.xlane.xlu0 %638
        %v640 = vrcp.pop %v639
        %v641 = vmul.f32 %v636, %v640
        %v642 = vmul.f32 %v602, %v608
        %vm643 = vcmp.ge.s32.totalorder %v450, 16
        %vm644 = vmand %vm643, %vm451
        %v645 = vsel %vm644, 1, 0
        %v646 = vcvt.s32.f32 %v645
        %v647 = vmul.f32 %v562, %v646
        %648 = vmatpush.xpose.msra.mxu0 0.0
        %649 = vmatpush.xpose.msra.mxu0 0.0
        %650 = vmatpush.xpose.msra.mxu0 0.0
        %651 = vmatpush.xpose.msra.mxu0 0.0
        %652 = vmatpush.xpose.msra.mxu0 0.0
        %653 = vmatpush.xpose.msra.mxu0 0.0
        %654 = vmatpush.xpose.msra.mxu0 0.0
        %655 = vmatpush.xpose.msra.mxu0 0.0
        %656 = vmatpush.xpose.msra.mxu0 0.0
        %657 = vmatpush.xpose.msra.mxu0 0.0
        %658 = vmatpush.xpose.msra.mxu0 0.0
        %659 = vmatpush.xpose.msra.mxu0 0.0
        %660 = vmatpush.xpose.msra.mxu0 0.0
        %661 = vmatpush.xpose.msra.mxu0 0.0
        %662 = vmatpush.xpose.msra.mxu0 0.0
        %663 = vmatpush.xpose.msra.mxu0 %v582
        %664 = vmatmul.f32.gmra.mxu0 %v647
        %v665 = vpop.f32.mrf.mxu0
        %v666 = vadd.f32 0.0, %v665
        %667 = vdwg.mxu0
        %v668 = vsel %vm630, %v666, -inf
        %669 = vmax.xlane.f32.xlu0 %v668
        %v670 = vpop.xlane.xlu0 %669
        %v671 = vsub.f32 %v666, %v670
        %v672 = vmul.f32 %v671, 1.442695
        %v673 = vpow.pop %v672
        %v674 = vsel %vm630, %v673, 0.0
        %675 = vadd.xlane.f32.xlu0 %v674
        %v676 = vpop.xlane.xlu0 %675
        %v677 = vrcp.pop %v676
        %v678 = vmul.f32 %v673, %v677
        %v679 = vmul.f32 %v602, %v646
        %v681 = vsel %vm630, %v678, 0
        %683 = vmatpush.msra.mxu0 0.0
        %684 = vmatpush.msra.mxu0 0.0
        %685 = vmatpush.msra.mxu0 0.0
        %686 = vmatpush.msra.mxu0 0.0
        %687 = vmatpush.msra.mxu0 0.0
        %688 = vmatpush.msra.mxu0 0.0
        %689 = vmatpush.msra.mxu0 0.0
        %690 = vmatpush.msra.mxu0 0.0
        %691 = vmatpush.msra.mxu0 0.0
        %692 = vmatpush.msra.mxu0 0.0
        %693 = vmatpush.msra.mxu0 0.0
        %694 = vmatpush.msra.mxu0 0.0
        %695 = vmatpush.msra.mxu0 0.0
        %696 = vmatpush.msra.mxu0 0.0
        %697 = vmatpush.msra.mxu0 0.0
        %698 = vmatpush.msra.mxu0 %v679
        %699 = vmatmul.f32.gmra.mxu0 %v681
        %v700 = vpop.f32.mrf.mxu0
        %v701 = vadd.f32 0.0, %v700
        %702 = vdwg.mxu0
        %v704 = vsel %vm630, %v641, 0
        %706 = vmatpush.msra.mxu0 0.0
        %707 = vmatpush.msra.mxu0 0.0
        %708 = vmatpush.msra.mxu0 0.0
        %709 = vmatpush.msra.mxu0 0.0
        %710 = vmatpush.msra.mxu0 0.0
        %711 = vmatpush.msra.mxu0 0.0
        %712 = vmatpush.msra.mxu0 0.0
        %713 = vmatpush.msra.mxu0 0.0
        %714 = vmatpush.msra.mxu0 0.0
        %715 = vmatpush.msra.mxu0 0.0
        %716 = vmatpush.msra.mxu0 0.0
        %717 = vmatpush.msra.mxu0 0.0
        %718 = vmatpush.msra.mxu0 0.0
        %719 = vmatpush.msra.mxu0 0.0
        %720 = vmatpush.msra.mxu0 0.0
        %721 = vmatpush.msra.mxu0 %v642
        %722 = vmatmul.f32.gmra.mxu0 %v704
        %v723 = vpop.f32.mrf.mxu0
        %v724 = vadd.f32 %v701, %v723
        %725 = vdwg.mxu0
        %v726 = vld [vmem:[%s439] sm:$0xff]
        %v727 = vld [vmem:[%s439 + $0x8] sm:$0xff]
        %v728 = vld [vmem:[%s439 + $0x10] sm:$0xff]
        %v729 = vld [vmem:[%s439 + $0x18] sm:$0xff]
        %v730 = vld [vmem:[%s439 + $0x20] sm:$0xff]
        %v731 = vld [vmem:[%s439 + $0x28] sm:$0xff]
        %v732 = vld [vmem:[%s439 + $0x30] sm:$0xff]
        %v733 = vld [vmem:[%s439 + $0x38] sm:$0xff]
        %v734 = vld [vmem:[%s439 + $0x40] sm:$0xff]
        %v735 = vld [vmem:[%s439 + $0x48] sm:$0xff]
        %v736 = vld [vmem:[%s439 + $0x50] sm:$0xff]
        %v737 = vld [vmem:[%s439 + $0x58] sm:$0xff]
        %v738 = vld [vmem:[%s439 + $0x60] sm:$0xff]
        %v739 = vld [vmem:[%s439 + $0x68] sm:$0xff]
        %v740 = vld [vmem:[%s439 + $0x70] sm:$0xff]
        %v741 = vld [vmem:[%s439 + $0x78] sm:$0xff]
        %v742 = vld [vmem:[%s444 + $0x1] ss:$0 sm:$0xff]
        %743 = vmatpush.msra.mxu0 %v741
        %744 = vmatpush.msra.mxu0 %v740
        %745 = vmatpush.msra.mxu0 %v739
        %746 = vmatpush.msra.mxu0 %v738
        %747 = vmatpush.msra.mxu0 %v737
        %748 = vmatpush.msra.mxu0 %v736
        %749 = vmatpush.msra.mxu0 %v735
        %750 = vmatpush.msra.mxu0 %v734
        %751 = vmatpush.msra.mxu0 %v733
        %752 = vmatpush.msra.mxu0 %v732
        %753 = vmatpush.msra.mxu0 %v731
        %754 = vmatpush.msra.mxu0 %v730
        %755 = vmatpush.msra.mxu0 %v729
        %756 = vmatpush.msra.mxu0 %v728
        %757 = vmatpush.msra.mxu0 %v727
        %758 = vmatpush.msra.mxu0 %v726
        %759 = vmatmul.f32.gmra.mxu0 %v724
        %v760 = vpop.f32.mrf.mxu0
        %v761 = vadd.f32 %v742, %v760
        %762 = vdwg.mxu0
        %v763 = vadd.f32 %v487, %v761
        %v764 = vld [vmem:[%s444 + $0x2] ss:$0 sm:$0xff]
        %v765 = vld [vmem:[%s444 + $0x3] ss:$0 sm:$0xff]
        %766 = vadd.xlane.f32.xlu0 %v763
        %v767 = vpop.xlane.xlu0 %766
        %v768 = vmul.f32 %v767, 0.03125
        %v769 = vsub.f32 %v763, %v768
        %v770 = vmul.f32 %v769, %v453
        %v771 = vmul.f32 %v770, %v770
        %772 = vadd.xlane.f32.xlu0 %v771
        %v773 = vpop.xlane.xlu0 %772
        %v774 = vmul.f32 %v773, 0.03125
        %v775 = vadd.f32 %v774, 1e-12
        %v776 = vrsqrt.pop %v775
        %v777 = vmul.f32 %v776, %v775
        %v778 = vmul.f32 %v777, %v776
        %v779 = vmul.f32 0.5, %v778
        %v780 = vsub.f32 1.5, %v779
        %v781 = vmul.f32 %v776, %v780
        %vm782 = vweird.f32 %v775
        %vm783 = vweird.f32 %v776
        %vm784 = vmor %vm782, %vm783
        %v785 = vsel %vm784, %v776, %v781
        %v786 = vmul.f32 %v770, %v785
        %v787 = vmul.f32 %v786, %v764
        %v788 = vadd.f32 %v787, %v765
        %v789 = vld [vmem:[%s366] sm:$0xff]
        %v790 = vld [vmem:[%s366 + $0x8] sm:$0xff]
        %v791 = vld [vmem:[%s366 + $0x10] sm:$0xff]
        %v792 = vld [vmem:[%s366 + $0x18] sm:$0xff]
        %v793 = vld [vmem:[%s366 + $0x20] sm:$0xff]
        %v794 = vld [vmem:[%s366 + $0x28] sm:$0xff]
        %v795 = vld [vmem:[%s366 + $0x30] sm:$0xff]
        %v796 = vld [vmem:[%s366 + $0x38] sm:$0xff]
        %v797 = vld [vmem:[%s366 + $0x40] sm:$0xff]
        %v798 = vld [vmem:[%s366 + $0x48] sm:$0xff]
        %v799 = vld [vmem:[%s366 + $0x50] sm:$0xff]
        %v800 = vld [vmem:[%s366 + $0x58] sm:$0xff]
        %v801 = vld [vmem:[%s366 + $0x60] sm:$0xff]
        %v802 = vld [vmem:[%s366 + $0x68] sm:$0xff]
        %v803 = vld [vmem:[%s366 + $0x70] sm:$0xff]
        %v804 = vld [vmem:[%s366 + $0x78] sm:$0xff]
        %v805 = vld [vmem:[%s444 + $0x4] ss:$0 sm:$0xff]
        %806 = vmatpush.msra.mxu0 %v804
        %807 = vmatpush.msra.mxu0 %v803
        %808 = vmatpush.msra.mxu0 %v802
        %809 = vmatpush.msra.mxu0 %v801
        %810 = vmatpush.msra.mxu0 %v800
        %811 = vmatpush.msra.mxu0 %v799
        %812 = vmatpush.msra.mxu0 %v798
        %813 = vmatpush.msra.mxu0 %v797
        %814 = vmatpush.msra.mxu0 %v796
        %815 = vmatpush.msra.mxu0 %v795
        %816 = vmatpush.msra.mxu0 %v794
        %817 = vmatpush.msra.mxu0 %v793
        %818 = vmatpush.msra.mxu0 %v792
        %819 = vmatpush.msra.mxu0 %v791
        %820 = vmatpush.msra.mxu0 %v790
        %821 = vmatpush.msra.mxu0 %v789
        %822 = vmatmul.f32.gmra.mxu0 %v788
        %v823 = vpop.f32.mrf.mxu0
        %v824 = vadd.f32 %v805, %v823
        %825 = vdwg.mxu0
        %v826 = vmul.f32 %v824, %v824
        %v827 = vmul.f32 %v824, %v826
        %v828 = vmul.f32 %v827, 0.044715
        %v829 = vadd.f32 %v824, %v828
        %v830 = vmul.f32 %v829, 0.7978846
        %v831 = vtanh.pop %v830
        %v832 = vadd.f32 %v831, 1.0
        %v833 = vmul.f32 %v832, 0.5
        %v834 = vmul.f32 %v824, %v833
        %v835 = vld [vmem:[%s376] sm:$0xff]
        %v836 = vld [vmem:[%s376 + $0x8] sm:$0xff]
        %v837 = vld [vmem:[%s376 + $0x10] sm:$0xff]
        %v838 = vld [vmem:[%s376 + $0x18] sm:$0xff]
        %v839 = vld [vmem:[%s376 + $0x20] sm:$0xff]
        %v840 = vld [vmem:[%s376 + $0x28] sm:$0xff]
        %v841 = vld [vmem:[%s376 + $0x30] sm:$0xff]
        %v842 = vld [vmem:[%s376 + $0x38] sm:$0xff]
        %v843 = vld [vmem:[%s376 + $0x40] sm:$0xff]
        %v844 = vld [vmem:[%s376 + $0x48] sm:$0xff]
        %v845 = vld [vmem:[%s376 + $0x50] sm:$0xff]
        %v846 = vld [vmem:[%s376 + $0x58] sm:$0xff]
        %v847 = vld [vmem:[%s376 + $0x60] sm:$0xff]
        %v848 = vld [vmem:[%s376 + $0x68] sm:$0xff]
        %v849 = vld [vmem:[%s376 + $0x70] sm:$0xff]
        %v850 = vld [vmem:[%s376 + $0x78] sm:$0xff]
        %v851 = vld [vmem:[%s444 + $0x5] ss:$0 sm:$0xff]
        %852 = vmatpush.msra.mxu0 %v850
        %853 = vmatpush.msra.mxu0 %v849
        %854 = vmatpush.msra.mxu0 %v848
        %855 = vmatpush.msra.mxu0 %v847
        %856 = vmatpush.msra.mxu0 %v846
        %857 = vmatpush.msra.mxu0 %v845
        %858 = vmatpush.msra.mxu0 %v844
        %859 = vmatpush.msra.mxu0 %v843
        %860 = vmatpush.msra.mxu0 %v842
        %861 = vmatpush.msra.mxu0 %v841
        %862 = vmatpush.msra.mxu0 %v840
        %863 = vmatpush.msra.mxu0 %v839
        %864 = vmatpush.msra.mxu0 %v838
        %865 = vmatpush.msra.mxu0 %v837
        %866 = vmatpush.msra.mxu0 %v836
        %867 = vmatpush.msra.mxu0 %v835
        %868 = vmatmul.f32.gmra.mxu0 %v834
        %v869 = vpop.f32.mrf.mxu0
        %v870 = vadd.f32 %v851, %v869
        %871 = vdwg.mxu0
        %v872 = vadd.f32 %v788, %v870
        %v873 = vld [vmem:[%s444 + $0x6] ss:$0 sm:$0xff]
        %v874 = vld [vmem:[%s444 + $0x7] ss:$0 sm:$0xff]
        %875 = vadd.xlane.f32.xlu0 %v872
        %v876 = vpop.xlane.xlu0 %875
        %v877 = vmul.f32 %v876, 0.03125
        %v878 = vsub.f32 %v872, %v877
        %v879 = vmul.f32 %v878, %v453
        %v880 = vmul.f32 %v879, %v879
        %881 = vadd.xlane.f32.xlu0 %v880
        %v882 = vpop.xlane.xlu0 %881
        %v883 = vmul.f32 %v882, 0.03125
        %v884 = vadd.f32 %v883, 1e-12
        %v885 = vrsqrt.pop %v884
        %v886 = vmul.f32 %v885, %v884
        %v887 = vmul.f32 %v886, %v885
        %v888 = vmul.f32 0.5, %v887
        %v889 = vsub.f32 1.5, %v888
        %v890 = vmul.f32 %v885, %v889
        %vm891 = vweird.f32 %v884
        %vm892 = vweird.f32 %v885
        %vm893 = vmor %vm891, %vm892
        %v894 = vsel %vm893, %v885, %v890
        %v895 = vmul.f32 %v879, %v894
        %v896 = vmul.f32 %v895, %v873
        %v897 = vadd.f32 %v896, %v874
        %898 = vst [vmem:[#allocation2] sm:$0xff] %v897
        %p899 = scmp.eq.s32.totalorder %s29, 1
        // Predicated region
        $region65: #{hf_text_encoder_forward.1} parent=47 // pred_check
          %p900 = pneg %p899
        $region66: #{hf_text_encoder_forward.1} parent=47 // pred_check_branch
          %902 = sbr.rel (%p900) target = $region68
        $region67: #{hf_text_encoder_forward.1} parent=47 // pred_region
          %903 = vst [vmem:[%s448] sm:$0xff] %v897
        $region68: #{hf_text_encoder_forward.1} parent=47 // pred_fallthru
          _
        %p904 = scmp.lt.s32.totalorder %s28, 1
        %s905 = scalar_select %p904, %s28, 1
        %s906 = smul.addr %s905, 8
        %s907 = scalar_lea.vmem %s7, %s906
        // Predicated region
        $region69: #{hf_text_encoder_forward.1} parent=47 // pred_check
          %p908 = pneg %p231
        $region70: #{hf_text_encoder_forward.1} parent=47 // pred_check_branch
          %910 = sbr.rel (%p908) target = $region72
        $region71: #{hf_text_encoder_forward.1} parent=47 // pred_region
          _
        $region72: #{hf_text_encoder_forward.1} parent=47 // pred_fallthru
          _
      $region48: #{hf_text_encoder_forward.1} parent=5 // pred_fallthru
        _
      %p911 = scmp.le.s32.totalorder 2, %s19
      // Predicated region
      $region73: #{hf_text_encoder_forward.1} parent=5 // pred_check
        %p912 = pneg %p911
      $region74: #{hf_text_encoder_forward.1} parent=5 // pred_check_branch
        %914 = sbr.rel (%p912) target = $region76
      $region75: #{hf_text_encoder_forward.1} parent=5 // pred_region
        %s915 = ssub.s32 %s19, 2
        // Predicated region
        $region77: #{hf_text_encoder_forward.1} parent=75 // pred_check
          %p916 = pneg %p237
        $region78: #{hf_text_encoder_forward.1} parent=75 // pred_check_branch
          %918 = sbr.rel (%p916) target = $region80
        $region79: #{hf_text_encoder_forward.1} parent=75 // pred_region
          %p919 = scmp.lt.s32.totalorder %s30, 1
          %s920 = scalar_select %p919, %s30, 1
          %s921 = smul.addr %s920, 8
          %s922 = scalar_lea.vmem %s7, %s921
        $region80: #{hf_text_encoder_forward.1} parent=75 // pred_fallthru
          _
      $region76: #{hf_text_encoder_forward.1} parent=5 // pred_fallthru
        _
    $region6: #{hf_text_encoder_forward.1} parent=1 // loop_footer
      %s23 = sadd.s32 1, %s19
    $region7: #{hf_text_encoder_forward.1} parent=1 // loop_footer_branch
      %18 = sbr.rel target = $region3
    $region8: #{hf_text_encoder_forward.1} parent=1 // loop_exit
      _
    %923 = vsyncpa [#allocation4], 1
    %s924 = scalar_lea.sflag [#allocation4], 1
    %925 = vsyncpa %s924, 1
    %926 = vsyncpa [#allocation6], 1
    %s927 = scalar_lea.sflag [#allocation6], 1
    %928 = vsyncpa %s927, 1

</llo_original>
